<compile_context>
chip_gen: v5e
topology: v5e:2x2
jax: 0.10.0
libtpu: 0.0.40
codegen_flags: <defaults>
</compile_context>

<pallas_src>
import jax
import jax.numpy as jnp
from jax.experimental import pallas as pl
from jax.experimental.pallas import tpu as pltpu


# ----------------------------------------------------------------------------- kernel
def tgcn_kernel(a_ref, x_ref, h_ref,
                wg_ref, bg_ref,          # fused GCN weight (F_in, 3C) bf16, bias (1, 3C) f32
                w1_ref,                  # block-diag [Wz1, Wr1, Wh1]  (3C, 3C) bf16
                wzr2_ref,                # [Wz2 | Wr2]                 (C, 2C)  bf16
                wh2_ref,                 # Wh2                         (C, C)   bf16
                bgate_ref,               # [bz | br | bh]              (1, 3C)  f32
                out_ref):                # (B*N, C) f32
    N = a_ref.shape[0]
    BN = x_ref.shape[0]
    B = BN // N
    C = h_ref.shape[-1]

    a = a_ref[...]                        # (N, N)    bf16
    x2 = x_ref[...]                       # (B*N, F)  bf16
    h2 = h_ref[...]                       # (B*N, C)  f32 (elementwise path stays f32)
    h2_b = h2.astype(jnp.bfloat16)

    # --- fused spatial GCN ----------------------------------------------------------
    # 1 MXU push: all three feature transforms, all batch elements.
    xw = jnp.dot(x2, wg_ref[...], preferred_element_type=jnp.float32)      # (B*N, 3C) f32
    xw_b = xw.astype(jnp.bfloat16)

    # B MXU pushes: shared adjacency applied per batch element (static unrolled loop).
    conv = jnp.concatenate(
        [jnp.dot(a, xw_b[b * N:(b + 1) * N, :], preferred_element_type=jnp.float32)
         for b in range(B)],
        axis=0) + bg_ref[...]                                               # (B*N, 3C) f32

    # --- fused gate linears ----------------------------------------------------------
    # 1 MXU push: conv-side projections through block-diag [Wz1, Wr1, Wh1].
    gate_c = jnp.dot(conv.astype(jnp.bfloat16), w1_ref[...],
                     preferred_element_type=jnp.float32)                    # (B*N, 3C) f32
    # 1 MXU push: H-side z/r projections fused.
    gate_h = jnp.dot(h2_b, wzr2_ref[...], preferred_element_type=jnp.float32)  # (B*N, 2C)

    bgate = bgate_ref[...]                                                  # (1, 3C) f32
    z = jax.nn.sigmoid(gate_c[:, 0:C] + gate_h[:, 0:C] + bgate[:, 0:C])
    r = jax.nn.sigmoid(gate_c[:, C:2 * C] + gate_h[:, C:2 * C] + bgate[:, C:2 * C])

    hr = (h2 * r).astype(jnp.bfloat16)
    # 1 MXU push: (H * R) @ Wh2.
    h_tilde = jnp.tanh(gate_c[:, 2 * C:3 * C]
                       + jnp.dot(hr, wh2_ref[...], preferred_element_type=jnp.float32)
                       + bgate[:, 2 * C:3 * C])

    # H_new = Z * H + (1 - Z) * H~     (output is tiny here; for production sizes pad C
    # or emit an (N, B*C) slab so the store is lane-dense.)
    out_ref[...] = z * h2 + (1.0 - z) * h_tilde


# ----------------------------------------------------------------------------- wrapper
@jax.jit
def tgcn_forward(a_hat, x, h, packed):
    """One TGCN cell step.  x: (B, N, F_in) f32, h: (B, N, C) f32, a_hat: (N, N) f32."""
    B, N, F_in = x.shape
    C = h.shape[-1]

    # Fold batch into the row (sublane) axis outside the kernel; cast matmul-only
    # operands to bf16 (halves DMA bytes, doubles MXU throughput).
    a_bf = a_hat.astype(jnp.bfloat16)
    x2 = x.reshape(B * N, F_in).astype(jnp.bfloat16)
    h2 = h.reshape(B * N, C)                     # keep f32 for the gating math

    vmem = pl.BlockSpec(memory_space=pltpu.MemorySpace.VMEM)
    out = pl.pallas_call(
        tgcn_kernel,
        out_shape=jax.ShapeDtypeStruct((B * N, C), jnp.float32),
        in_specs=[vmem] * 9,
        out_specs=vmem,
    )(a_bf, x2, h2,
      packed["wg"], packed["bg"], packed["w1bd"],
      packed["wzr2"], packed["wh2"], packed["bgate"])
    return out.reshape(B, N, C)


# ----------------------------------------------------------------------------- packing
def pack_params(p, matmul_dtype=jnp.bfloat16):
    """Pack per-gate weights into the fused layouts the kernel expects (done once)."""
    c = p["wz1"].shape[0]
    wg = jnp.concatenate([p["wgz"], p["wgr"], p["wgh"]], axis=1).astype(matmul_dtype)
    bg = jnp.concatenate([p["bgz"], p["bgr"], p["bgh"]], axis=1).astype(jnp.float32)

    w1bd = jnp.zeros((3 * c, 3 * c), jnp.float32)
    w1bd = w1bd.at[0:c, 0:c].set(p["wz1"])
    w1bd = w1bd.at[c:2 * c, c:2 * c].set(p["wr1"])
    w1bd = w1bd.at[2 * c:, 2 * c:].set(p["wh1"])
    w1bd = w1bd.astype(matmul_dtype)

    wzr2 = jnp.concatenate([p["wz2"], p["wr2"]], axis=1).astype(matmul_dtype)
    wh2 = p["wh2"].astype(matmul_dtype)
    bgate = jnp.concatenate([p["bz"], p["br"], p["bh"]], axis=1).astype(jnp.float32)
    return {"wg": wg, "bg": bg, "w1bd": w1bd, "wzr2": wzr2, "wh2": wh2, "bgate": bgate}


# ----------------------------------------------------------------------------- glue
def build_normalized_adjacency(edge_index, edge_weight, num_nodes):
    """Dense D^{-1/2}(A + I)D^{-1/2} from edge_index/edge_weight (plain-JAX glue).
    Assumes a symmetric weighted adjacency (true for the undirected test graph)."""
    src, dst = edge_index
    a = jnp.zeros((num_nodes, num_nodes), jnp.float32)
    a = a.at[src, dst].add(edge_weight)
    a = a + jnp.eye(num_nodes, dtype=jnp.float32)       # self loops
    deg = jnp.sum(a, axis=1)
    d_inv_sqrt = 1.0 / jnp.sqrt(jnp.maximum(deg, 1e-12))
    return a * d_inv_sqrt[:, None] * d_inv_sqrt[None, :]


def init_params(key, f_in, c):
    ks = jax.random.split(key, 12)

    def gcn_w(k):
        scale = jnp.sqrt(6.0 / (f_in + c))                     # glorot-like
        return jax.random.uniform(k, (f_in, c), jnp.float32, -scale, scale)

    def lin_w(k):
        # torch.nn.Linear(2C, C) default init; stored pre-split & pre-transposed:
        # W (C, 2C) -> W.T (2C, C) -> [W1 (C, C); W2 (C, C)]
        bound = 1.0 / jnp.sqrt(2.0 * c)
        wt = jax.random.uniform(k, (2 * c, c), jnp.float32, -bound, bound)
        return wt[:c], wt[c:]

    def lin_b(k):
        bound = 1.0 / jnp.sqrt(2.0 * c)
        return jax.random.uniform(k, (1, c), jnp.float32, -bound, bound)

    wz1, wz2 = lin_w(ks[6])
    wr1, wr2 = lin_w(ks[7])
    wh1, wh2 = lin_w(ks[8])
    return {
        "wgz": gcn_w(ks[0]), "bgz": jnp.zeros((1, c), jnp.float32),
        "wgr": gcn_w(ks[1]), "bgr": jnp.zeros((1, c), jnp.float32),
        "wgh": gcn_w(ks[2]), "bgh": jnp.zeros((1, c), jnp.float32),
        "wz1": wz1, "wz2": wz2, "bz": lin_b(ks[9]),
        "wr1": wr1, "wr2": wr2, "br": lin_b(ks[10]),
        "wh1": wh1, "wh2": wh2, "bh": lin_b(ks[11]),
    }


def tgcn_reference(a_hat, x, h, p, matmul_dtype=jnp.float32):
    """Pure-JAX reference mirroring the PyTorch forward.  With matmul_dtype=bfloat16 it
    mirrors the kernel's mixed precision (bf16 operands, f32 accumulation)."""
    cast = lambda v: v.astype(matmul_dtype)

    def gconv(w, b):
        xw = jnp.einsum("bnf,fc->bnc", cast(x), cast(w),
                        preferred_element_type=jnp.float32)
        return jnp.einsum("nm,bmc->bnc", cast(a_hat), cast(xw),
                          preferred_element_type=jnp.float32) + b

    def lin(u, v, w1, w2, b):
        return (jnp.einsum("bnc,cd->bnd", cast(u), cast(w1),
                           preferred_element_type=jnp.float32)
                + jnp.einsum("bnc,cd->bnd", cast(v), cast(w2),
                             preferred_element_type=jnp.float32) + b)

    z = jax.nn.sigmoid(lin(gconv(p["wgz"], p["bgz"]), h, p["wz1"], p["wz2"], p["bz"]))
    r = jax.nn.sigmoid(lin(gconv(p["wgr"], p["bgr"]), h, p["wr1"], p["wr2"], p["br"]))
    h_tilde = jnp.tanh(lin(gconv(p["wgh"], p["bgh"]), h * r, p["wh1"], p["wh2"], p["bh"]))
    return z * h + (1.0 - z) * h_tilde


# ----------------------------------------------------------------------------- main
if __name__ == "__main__":
    B, N, F_IN, C_OUT = 2, 16, 4, 32

    key = jax.random.PRNGKey(0)
    k_x, k_h, k_ew, k_p = jax.random.split(key, 4)

    # deterministic small ring graph with random positive edge weights (undirected)
    src = jnp.arange(N, dtype=jnp.int32)
    dst = (src + 1) % N
    edge_index = jnp.stack([jnp.concatenate([src, dst]),
                            jnp.concatenate([dst, src])])            # (2, 2N)
    edge_weight = jax.random.uniform(k_ew, (2 * N,), jnp.float32, 0.5, 1.5)

    x = jax.random.normal(k_x, (B, N, F_IN), jnp.float32)
    h0 = 0.5 * jax.random.normal(k_h, (B, N, C_OUT), jnp.float32)    # explicit hidden state
    params = init_params(k_p, F_IN, C_OUT)
    packed = pack_params(params)

    a_hat = build_normalized_adjacency(edge_index, edge_weight, N)

    h_new = tgcn_forward(a_hat, x, h0, packed)
    h_new = jax.block_until_ready(h_new)
    assert h_new.shape == (B, N, C_OUT)

    # tight check vs. a reference that mirrors the kernel's bf16-operand / f32-acc math
    h_ref_bf16 = tgcn_reference(a_hat, x, h0, params, matmul_dtype=jnp.bfloat16)
    assert jnp.allclose(h_new, h_ref_bf16, atol=5e-3, rtol=5e-3), "mismatch vs bf16 reference"

    # loose sanity check vs. the full-f32 module semantics
    h_ref_f32 = tgcn_reference(a_hat, x, h0, params, matmul_dtype=jnp.float32)
    assert jnp.allclose(h_new, h_ref_f32, atol=1e-1, rtol=0.0), "mismatch vs f32 reference"

    print("KERNEL_OK")
</pallas_src>

<mosaic_0001>
module attributes {stable_mosaic.version = 11 : i64} {
  func.func @tgcn_kernel(%arg0: memref<16x16xbf16, #tpu.memory_space<vmem>>, %arg1: memref<32x4xbf16, #tpu.memory_space<vmem>>, %arg2: memref<32x32xf32, #tpu.memory_space<vmem>>, %arg3: memref<4x96xbf16, #tpu.memory_space<vmem>>, %arg4: memref<1x96xf32, #tpu.memory_space<vmem>>, %arg5: memref<96x96xbf16, #tpu.memory_space<vmem>>, %arg6: memref<32x64xbf16, #tpu.memory_space<vmem>>, %arg7: memref<32x32xbf16, #tpu.memory_space<vmem>>, %arg8: memref<1x96xf32, #tpu.memory_space<vmem>>, %arg9: memref<32x32xf32, #tpu.memory_space<vmem>>) attributes {dimension_semantics = [], scalar_prefetch = 0 : i64, scratch_operands = 0 : i64, tpu.core_type = #tpu.core_type<tc>} {
    %c0 = arith.constant 0 : index
    %c0_0 = arith.constant 0 : index
    %0 = vector.load %arg0[%c0, %c0_0] : memref<16x16xbf16, #tpu.memory_space<vmem>>, vector<16x16xbf16>
    %c0_1 = arith.constant 0 : index
    %c0_2 = arith.constant 0 : index
    %1 = vector.load %arg1[%c0_1, %c0_2] : memref<32x4xbf16, #tpu.memory_space<vmem>>, vector<32x4xbf16>
    %c0_3 = arith.constant 0 : index
    %c0_4 = arith.constant 0 : index
    %2 = vector.load %arg2[%c0_3, %c0_4] : memref<32x32xf32, #tpu.memory_space<vmem>>, vector<32x32xf32>
    %3 = arith.truncf %2 : vector<32x32xf32> to vector<32x32xbf16>
    %c0_5 = arith.constant 0 : index
    %c0_6 = arith.constant 0 : index
    %4 = vector.load %arg3[%c0_5, %c0_6] : memref<4x96xbf16, #tpu.memory_space<vmem>>, vector<4x96xbf16>
    %cst = arith.constant dense<0.000000e+00> : vector<32x96xf32>
    %5 = tpu.matmul %1, %4, %cst {dimension_numbers = #tpu.dot_dimension_numbers<[1], [0], [0], [1], [0, 0, 1, 1], [], []>} : vector<32x4xbf16>, vector<4x96xbf16>, vector<32x96xf32> -> vector<32x96xf32>
    %6 = arith.truncf %5 : vector<32x96xf32> to vector<32x96xbf16>
    %7 = vector.extract_strided_slice %6 {offsets = [0, 0], sizes = [16, 96], strides = [1, 1]} : vector<32x96xbf16> to vector<16x96xbf16>
    %cst_7 = arith.constant dense<0.000000e+00> : vector<16x96xf32>
    %8 = tpu.matmul %0, %7, %cst_7 {dimension_numbers = #tpu.dot_dimension_numbers<[1], [0], [0], [1], [0, 0, 1, 1], [], []>} : vector<16x16xbf16>, vector<16x96xbf16>, vector<16x96xf32> -> vector<16x96xf32>
    %9 = vector.extract_strided_slice %6 {offsets = [16, 0], sizes = [16, 96], strides = [1, 1]} : vector<32x96xbf16> to vector<16x96xbf16>
    %cst_8 = arith.constant dense<0.000000e+00> : vector<16x96xf32>
    %10 = tpu.matmul %0, %9, %cst_8 {dimension_numbers = #tpu.dot_dimension_numbers<[1], [0], [0], [1], [0, 0, 1, 1], [], []>} : vector<16x16xbf16>, vector<16x96xbf16>, vector<16x96xf32> -> vector<16x96xf32>
    %11 = tpu.concatenate %8, %10 in 0 : vector<16x96xf32>, vector<16x96xf32> -> vector<32x96xf32>
    %c0_9 = arith.constant 0 : index
    %c0_10 = arith.constant 0 : index
    %12 = vector.load %arg4[%c0_9, %c0_10] : memref<1x96xf32, #tpu.memory_space<vmem>>, vector<1x96xf32>
    %13 = vector.broadcast %12 : vector<1x96xf32> to vector<32x96xf32>
    %14 = arith.addf %11, %13 : vector<32x96xf32>
    %15 = arith.truncf %14 : vector<32x96xf32> to vector<32x96xbf16>
    %c0_11 = arith.constant 0 : index
    %c0_12 = arith.constant 0 : index
    %16 = vector.load %arg5[%c0_11, %c0_12] : memref<96x96xbf16, #tpu.memory_space<vmem>>, vector<96x96xbf16>
    %cst_13 = arith.constant dense<0.000000e+00> : vector<32x96xf32>
    %17 = tpu.matmul %15, %16, %cst_13 {dimension_numbers = #tpu.dot_dimension_numbers<[1], [0], [0], [1], [0, 0, 1, 1], [], []>} : vector<32x96xbf16>, vector<96x96xbf16>, vector<32x96xf32> -> vector<32x96xf32>
    %c0_14 = arith.constant 0 : index
    %c0_15 = arith.constant 0 : index
    %18 = vector.load %arg6[%c0_14, %c0_15] : memref<32x64xbf16, #tpu.memory_space<vmem>>, vector<32x64xbf16>
    %cst_16 = arith.constant dense<0.000000e+00> : vector<32x64xf32>
    %19 = tpu.matmul %3, %18, %cst_16 {dimension_numbers = #tpu.dot_dimension_numbers<[1], [0], [0], [1], [0, 0, 1, 1], [], []>} : vector<32x32xbf16>, vector<32x64xbf16>, vector<32x64xf32> -> vector<32x64xf32>
    %c0_17 = arith.constant 0 : index
    %c0_18 = arith.constant 0 : index
    %20 = vector.load %arg8[%c0_17, %c0_18] : memref<1x96xf32, #tpu.memory_space<vmem>>, vector<1x96xf32>
    %21 = vector.extract_strided_slice %17 {offsets = [0, 0], sizes = [32, 32], strides = [1, 1]} : vector<32x96xf32> to vector<32x32xf32>
    %22 = vector.extract_strided_slice %19 {offsets = [0, 0], sizes = [32, 32], strides = [1, 1]} : vector<32x64xf32> to vector<32x32xf32>
    %23 = arith.addf %21, %22 : vector<32x32xf32>
    %24 = vector.extract_strided_slice %20 {offsets = [0, 0], sizes = [1, 32], strides = [1, 1]} : vector<1x96xf32> to vector<1x32xf32>
    %25 = vector.broadcast %24 : vector<1x32xf32> to vector<32x32xf32>
    %26 = arith.addf %23, %25 : vector<32x32xf32>
    %27 = arith.negf %26 : vector<32x32xf32>
    %28 = math.exp %27 : vector<32x32xf32>
    %cst_19 = arith.constant 1.000000e+00 : f32
    %29 = vector.broadcast %cst_19 : f32 to vector<32x32xf32>
    %30 = arith.addf %29, %28 : vector<32x32xf32>
    %31 = arith.divf %29, %30 : vector<32x32xf32>
    %32 = vector.extract_strided_slice %17 {offsets = [0, 32], sizes = [32, 32], strides = [1, 1]} : vector<32x96xf32> to vector<32x32xf32>
    %33 = vector.extract_strided_slice %19 {offsets = [0, 32], sizes = [32, 32], strides = [1, 1]} : vector<32x64xf32> to vector<32x32xf32>
    %34 = arith.addf %32, %33 : vector<32x32xf32>
    %35 = vector.extract_strided_slice %20 {offsets = [0, 32], sizes = [1, 32], strides = [1, 1]} : vector<1x96xf32> to vector<1x32xf32>
    %36 = vector.broadcast %35 : vector<1x32xf32> to vector<32x32xf32>
    %37 = arith.addf %34, %36 : vector<32x32xf32>
    %38 = arith.negf %37 : vector<32x32xf32>
    %39 = math.exp %38 : vector<32x32xf32>
    %cst_20 = arith.constant 1.000000e+00 : f32
    %40 = vector.broadcast %cst_20 : f32 to vector<32x32xf32>
    %41 = arith.addf %40, %39 : vector<32x32xf32>
    %42 = arith.divf %40, %41 : vector<32x32xf32>
    %43 = arith.mulf %2, %42 : vector<32x32xf32>
    %44 = arith.truncf %43 : vector<32x32xf32> to vector<32x32xbf16>
    %45 = vector.extract_strided_slice %17 {offsets = [0, 64], sizes = [32, 32], strides = [1, 1]} : vector<32x96xf32> to vector<32x32xf32>
    %c0_21 = arith.constant 0 : index
    %c0_22 = arith.constant 0 : index
    %46 = vector.load %arg7[%c0_21, %c0_22] : memref<32x32xbf16, #tpu.memory_space<vmem>>, vector<32x32xbf16>
    %cst_23 = arith.constant dense<0.000000e+00> : vector<32x32xf32>
    %47 = tpu.matmul %44, %46, %cst_23 {dimension_numbers = #tpu.dot_dimension_numbers<[1], [0], [0], [1], [0, 0, 1, 1], [], []>} : vector<32x32xbf16>, vector<32x32xbf16>, vector<32x32xf32> -> vector<32x32xf32>
    %48 = arith.addf %45, %47 : vector<32x32xf32>
    %49 = vector.extract_strided_slice %20 {offsets = [0, 64], sizes = [1, 32], strides = [1, 1]} : vector<1x96xf32> to vector<1x32xf32>
    %50 = vector.broadcast %49 : vector<1x32xf32> to vector<32x32xf32>
    %51 = arith.addf %48, %50 : vector<32x32xf32>
    %52 = math.tanh %51 : vector<32x32xf32>
    %53 = arith.mulf %31, %2 : vector<32x32xf32>
    %cst_24 = arith.constant 1.000000e+00 : f32
    %54 = vector.broadcast %cst_24 : f32 to vector<32x32xf32>
    %55 = arith.subf %54, %31 : vector<32x32xf32>
    %56 = arith.mulf %55, %52 : vector<32x32xf32>
    %57 = arith.addf %53, %56 : vector<32x32xf32>
    %c0_25 = arith.constant 0 : index
    %c0_26 = arith.constant 0 : index
    %58 = vector.load %arg9[%c0_25, %c0_26] : memref<32x32xf32, #tpu.memory_space<vmem>>, vector<32x32xf32>
    tpu.vector_store %arg9[%c0_25, %c0_26], %57 {strides = array<i32>} : memref<32x32xf32, #tpu.memory_space<vmem>>, vector<32x32xf32>,
    return
  }
}

</mosaic_0001>

<llo_original>
// kernel: tgcn_forward.1
$region0: #{tgcn_forward.1}
  #allocation0 [shape = 'u32[]', space=smem, size = 0x4, offset = 0x4, fixed_abs, tag = 'smem constant byte address 0x4 - core index']
  #allocation1 [shape = 'u32[72,128]{1,0:T(1,128)}', space=vmem, size = 0x9000, scoped, tag = 'internal scratch']
  %s0 = inlined_call_operand.vmem [shape: bf16[16,16], index: 0, kind: input, shape index: {}]
  %s1 = inlined_call_operand.vmem [shape: bf16[32,4], index: 1, kind: input, shape index: {}]
  %s2 = inlined_call_operand.hbm [shape: f32[32,32], index: 2, kind: input, shape index: {}]
  %s3 = inlined_call_operand.hbm [shape: bf16[4,96], index: 3, kind: input, shape index: {}]
  %s4 = inlined_call_operand.hbm [shape: f32[1,96], index: 4, kind: input, shape index: {}]
  %s5 = inlined_call_operand.vmem [shape: bf16[96,96], index: 5, kind: input, shape index: {}]
  %s6 = inlined_call_operand.vmem [shape: bf16[32,64], index: 6, kind: input, shape index: {}]
  %s7 = inlined_call_operand.hbm [shape: bf16[32,32], index: 7, kind: input, shape index: {}]
  %s8 = inlined_call_operand.hbm [shape: f32[1,96], index: 8, kind: input, shape index: {}]
  %s9 = inlined_call_operand.hbm [shape: f32[32,32], index: 9, kind: output, shape index: {}]
  %s10 = sld [smem:[#allocation0]]
  $region66: #{tgcn_forward.1} parent=0
    _
  %s12 = ssub.s32 1, %s10
  %s13 = scalar_select 0, %s12, %s10
  $region1: #{tgcn_forward.1} parent=0
    #allocation2 [shape = 'u8[16384]{0}', space=vmem, size = 0x4000, scoped, tag = 'input window, operand 2, single buffered']
    #allocation3 [shape = 's32[1]{0}', space=sflag, size = 0x4, scoped, tag = 'scoped memory for tgcn_forward.1']
    #allocation4 [shape = 's32[1]{0}', space=sflag, size = 0x4, scoped, tag = 'scoped memory for tgcn_forward.1']
    #allocation5 [shape = 'u8[1024]{0}', space=vmem, size = 0x400, scoped, tag = 'input window, operand 3, single buffered']
    #allocation6 [shape = 's32[1]{0}', space=sflag, size = 0x4, scoped, tag = 'scoped memory for tgcn_forward.1']
    #allocation7 [shape = 'u8[512]{0}', space=vmem, size = 0x400, scoped, tag = 'input window, operand 4, single buffered']
    #allocation8 [shape = 'u8[8192]{0}', space=vmem, size = 0x2000, scoped, tag = 'input window, operand 7, single buffered']
    #allocation9 [shape = 's32[1]{0}', space=sflag, size = 0x4, scoped, tag = 'scoped memory for tgcn_forward.1']
    #allocation10 [shape = 'u8[512]{0}', space=vmem, size = 0x400, scoped, tag = 'input window, operand 8, single buffered']
    #allocation11 [shape = 'u8[16384]{0}', space=vmem, size = 0x4000, scoped, tag = 'output window, operand 0, single buffered']
    %14 = vsyncpa [#allocation3], 0
    %15 = vsyncpa [#allocation6], 0
    %16 = vsyncpa [#allocation9], 0
    %17 = vsyncpa [#allocation4], 0
    // Predicated region
    $region2: #{tgcn_forward.1} parent=1 // pred_check
      _
    $region3: #{tgcn_forward.1} parent=1 // pred_check_branch
      %19 = sbr.rel (0) target = $region5
    $region4: #{tgcn_forward.1} parent=1 // pred_region
      _
    $region5: #{tgcn_forward.1} parent=1 // pred_fallthru
      _
    // Predicated region
    $region6: #{tgcn_forward.1} parent=1 // pred_check
      _
    $region7: #{tgcn_forward.1} parent=1 // pred_check_branch
      %21 = sbr.rel (0) target = $region9
    $region8: #{tgcn_forward.1} parent=1 // pred_region
      _
    $region9: #{tgcn_forward.1} parent=1 // pred_fallthru
      _
    // Predicated region
    $region10: #{tgcn_forward.1} parent=1 // pred_check
      _
    $region11: #{tgcn_forward.1} parent=1 // pred_check_branch
      %23 = sbr.rel (0) target = $region13
    $region12: #{tgcn_forward.1} parent=1 // pred_region
      %25 = vsyncadd [#allocation3], 0
      %s26 = sshll.u32 %s2, 4
      %s27 = int_to_ptr.hbm [resolvable:$true] %s26
      %s28 = sshll.u32 [#allocation2], 4
      %s29 = int_to_ptr.vmem [resolvable:$true] %s28
      %34 = dma.hbm_to_vmem [thread:$0]  %s27, 512, %s29, [#allocation3], 128, 128, 8
    $region13: #{tgcn_forward.1} parent=1 // pred_fallthru
      _
    // Predicated region
    $region14: #{tgcn_forward.1} parent=1 // pred_check
      _
    $region15: #{tgcn_forward.1} parent=1 // pred_check_branch
      %36 = sbr.rel (0) target = $region17
    $region16: #{tgcn_forward.1} parent=1 // pred_region
      %38 = vsyncadd [#allocation6], 0
      %s40 = sshll.u32 %s3, 4
      %s41 = int_to_ptr.hbm [resolvable:$true] %s40
      %s42 = sshll.u32 [#allocation5], 4
      %s43 = int_to_ptr.vmem [resolvable:$true] %s42
      %45 = dma.hbm_to_vmem [thread:$0]  %s41, 32, %s43, [#allocation6]
    $region17: #{tgcn_forward.1} parent=1 // pred_fallthru
      _
    // Predicated region
    $region18: #{tgcn_forward.1} parent=1 // pred_check
      _
    $region19: #{tgcn_forward.1} parent=1 // pred_check_branch
      %47 = sbr.rel (0) target = $region21
    $region20: #{tgcn_forward.1} parent=1 // pred_region
      %49 = vsyncadd [#allocation6], 0
      %s51 = sshll.u32 %s4, 4
      %s52 = int_to_ptr.hbm [resolvable:$true] %s51
      %s53 = sshll.u32 [#allocation7], 4
      %s54 = int_to_ptr.vmem [resolvable:$true] %s53
      %56 = dma.hbm_to_vmem [thread:$0]  %s52, 16, %s54, [#allocation6]
    $region21: #{tgcn_forward.1} parent=1 // pred_fallthru
      _
    // Predicated region
    $region22: #{tgcn_forward.1} parent=1 // pred_check
      _
    $region23: #{tgcn_forward.1} parent=1 // pred_check_branch
      %58 = sbr.rel (0) target = $region25
    $region24: #{tgcn_forward.1} parent=1 // pred_region
      _
    $region25: #{tgcn_forward.1} parent=1 // pred_fallthru
      _
    // Predicated region
    $region26: #{tgcn_forward.1} parent=1 // pred_check
      _
    $region27: #{tgcn_forward.1} parent=1 // pred_check_branch
      %60 = sbr.rel (0) target = $region29
    $region28: #{tgcn_forward.1} parent=1 // pred_region
      _
    $region29: #{tgcn_forward.1} parent=1 // pred_fallthru
      _
    // Predicated region
    $region30: #{tgcn_forward.1} parent=1 // pred_check
      _
    $region31: #{tgcn_forward.1} parent=1 // pred_check_branch
      %62 = sbr.rel (0) target = $region33
    $region32: #{tgcn_forward.1} parent=1 // pred_region
      %64 = vsyncadd [#allocation9], 0
      %s65 = sshll.u32 %s7, 4
      %s66 = int_to_ptr.hbm [resolvable:$true] %s65
      %s67 = sshll.u32 [#allocation8], 4
      %s68 = int_to_ptr.vmem [resolvable:$true] %s67
      %73 = dma.hbm_to_vmem [thread:$0]  %s66, 256, %s68, [#allocation9], 64, 64, 4
    $region33: #{tgcn_forward.1} parent=1 // pred_fallthru
      _
    // Predicated region
    $region34: #{tgcn_forward.1} parent=1 // pred_check
      _
    $region35: #{tgcn_forward.1} parent=1 // pred_check_branch
      %75 = sbr.rel (0) target = $region37
    $region36: #{tgcn_forward.1} parent=1 // pred_region
      %77 = vsyncadd [#allocation9], 0
      %s79 = sshll.u32 %s8, 4
      %s80 = int_to_ptr.hbm [resolvable:$true] %s79
      %s81 = sshll.u32 [#allocation10], 4
      %s82 = int_to_ptr.vmem [resolvable:$true] %s81
      %84 = dma.hbm_to_vmem [thread:$0]  %s80, 16, %s82, [#allocation9]
    $region37: #{tgcn_forward.1} parent=1 // pred_fallthru
      _
    // Predicated region
    $region38: #{tgcn_forward.1} parent=1 // pred_check
      _
    $region39: #{tgcn_forward.1} parent=1 // pred_check_branch
      %86 = sbr.rel (0) target = $region41
    $region40: #{tgcn_forward.1} parent=1 // pred_region
      %88 = dma.done [#allocation3], 512
    $region41: #{tgcn_forward.1} parent=1 // pred_fallthru
      _
    // Predicated region
    $region42: #{tgcn_forward.1} parent=1 // pred_check
      _
    $region43: #{tgcn_forward.1} parent=1 // pred_check_branch
      %90 = sbr.rel (0) target = $region45
    $region44: #{tgcn_forward.1} parent=1 // pred_region
      %92 = dma.done [#allocation6], 32
    $region45: #{tgcn_forward.1} parent=1 // pred_fallthru
      _
    // Predicated region
    $region46: #{tgcn_forward.1} parent=1 // pred_check
      _
    $region47: #{tgcn_forward.1} parent=1 // pred_check_branch
      %94 = sbr.rel (0) target = $region49
    $region48: #{tgcn_forward.1} parent=1 // pred_region
      %96 = dma.done [#allocation6], 16
    $region49: #{tgcn_forward.1} parent=1 // pred_fallthru
      _
    // Predicated region
    $region50: #{tgcn_forward.1} parent=1 // pred_check
      _
    $region51: #{tgcn_forward.1} parent=1 // pred_check_branch
      %98 = sbr.rel (0) target = $region53
    $region52: #{tgcn_forward.1} parent=1 // pred_region
      %100 = dma.done [#allocation9], 256
    $region53: #{tgcn_forward.1} parent=1 // pred_fallthru
      _
    // Predicated region
    $region54: #{tgcn_forward.1} parent=1 // pred_check
      _
    $region55: #{tgcn_forward.1} parent=1 // pred_check_branch
      %102 = sbr.rel (0) target = $region57
    $region56: #{tgcn_forward.1} parent=1 // pred_region
      %104 = dma.done [#allocation9], 16
    $region57: #{tgcn_forward.1} parent=1 // pred_fallthru
      _
    %v106 = vld [vmem:[%s0] sm:$0xf]
    %v107 = vld [vmem:[%s0 + $0x4] sm:$0xf]
    %v108 = vld [vmem:[%s1] sm:$0xf]
    %v109 = vld [vmem:[%s1 + $0x4] sm:$0xf]
    %v110 = vld [vmem:[%s1 + $0x8] sm:$0xf]
    %v111 = vld [vmem:[%s1 + $0xc] sm:$0xf]
    %v112 = vld [vmem:[#allocation2] sm:$0xff]
    %v113 = vld [vmem:[#allocation2 + $0x8] sm:$0xff]
    %v114 = vld [vmem:[#allocation2 + $0x10] sm:$0xff]
    %v115 = vld [vmem:[#allocation2 + $0x18] sm:$0xff]
    %v116 = vpack.c.bf16 %v113, %v112
    %v117 = vpack.c.bf16 %v115, %v114
    %v118 = vld [vmem:[#allocation5] sm:$0x3]
    %v123 = vunpack.c.l.b16 %v108
    %v124 = vunpack.c.l.b16 %v109
    %v125 = vunpack.c.l.b16 %v110
    %v126 = vunpack.c.l.b16 %v111
    %v127 = vpack.c.b16 %v124, %v123
    %v128 = vpack.c.b16 %v126, %v125
    %vm129 = vcmask 31744
    %v131 = vsel %vm129, %v127, 0
    %v134 = vsel %vm129, %v128, 0
    %vm136 = vcmask 1041408
    %v138 = vsel %vm136, %v118, 0
    %140 = vmatpush.bf16.msra.mxu0 0
    %141 = vmatpush.bf16.msra.mxu0 0
    %142 = vmatpush.bf16.msra.mxu0 0
    %143 = vmatpush.bf16.msra.mxu0 0
    %144 = vmatpush.bf16.msra.mxu0 0
    %145 = vmatpush.bf16.msra.mxu0 0
    %146 = vmatpush.bf16.msra.mxu0 0
    %147 = vmatpush.bf16.msra.mxu0 %v138
    %148 = vmatmul.bf16.gmra.mxu0 %v131
    %v149 = vpop.f32.mrf.mxu0
    %v150 = vadd.f32 0.0, %v149
    %v151 = vpop.f32.mrf.mxu0
    %v152 = vadd.f32 0.0, %v151
    %153 = vmatmul.bf16.gmra.mxu0 %v134
    %v154 = vpop.f32.mrf.mxu0
    %v155 = vadd.f32 0.0, %v154
    %v156 = vpop.f32.mrf.mxu0
    %v157 = vadd.f32 0.0, %v156
    %158 = vdwg.mxu0
    %v159 = vpack.c.bf16 %v150, %v150
    %v160 = vpack.c.bf16 %v152, %v152
    %v161 = vpack.c.bf16 %v155, %v155
    %v162 = vpack.c.bf16 %v157, %v157
    %v165 = vunpack.c.l.b16 %v106
    %v166 = vunpack.c.l.b16 %v107
    %v167 = vpack.c.b16 %v166, %v165
    %v170 = vunpack.c.l.b16 %v159
    %v171 = vunpack.c.l.b16 %v160
    %v172 = vpack.c.b16 %v171, %v170
    %vm174 = vcmask 130048
    %v176 = vsel %vm174, %v167, 0
    %178 = vmatpush.bf16.msra.mxu0 0
    %179 = vmatpush.bf16.msra.mxu0 0
    %180 = vmatpush.bf16.msra.mxu0 0
    %181 = vmatpush.bf16.msra.mxu0 0
    %182 = vmatpush.bf16.msra.mxu0 0
    %183 = vmatpush.bf16.msra.mxu0 0
    %184 = vmatpush.bf16.msra.mxu0 0
    %185 = vmatpush.bf16.msra.mxu0 %v172
    %186 = vmatmul.bf16.gmra.mxu0 %v176
    %v187 = vpop.f32.mrf.mxu0
    %v188 = vadd.f32 0.0, %v187
    %v189 = vpop.f32.mrf.mxu0
    %v190 = vadd.f32 0.0, %v189
    %191 = vdwg.mxu0
    %v194 = vunpack.c.l.b16 %v161
    %v195 = vunpack.c.l.b16 %v162
    %v196 = vpack.c.b16 %v195, %v194
    %198 = vmatpush.bf16.msra.mxu0 0
    %199 = vmatpush.bf16.msra.mxu0 0
    %200 = vmatpush.bf16.msra.mxu0 0
    %201 = vmatpush.bf16.msra.mxu0 0
    %202 = vmatpush.bf16.msra.mxu0 0
    %203 = vmatpush.bf16.msra.mxu0 0
    %204 = vmatpush.bf16.msra.mxu0 0
    %205 = vmatpush.bf16.msra.mxu0 %v196
    %206 = vmatmul.bf16.gmra.mxu0 %v176
    %v207 = vpop.f32.mrf.mxu0
    %v208 = vadd.f32 0.0, %v207
    %v209 = vpop.f32.mrf.mxu0
    %v210 = vadd.f32 0.0, %v209
    %211 = vdwg.mxu0
    %v212 = vld [vmem:[#allocation7] sm:$0x1]
    %v214 = vperm.slane %v212, 0
    %v216 = vadd.f32 %v188, %v214
    %v217 = vadd.f32 %v190, %v214
    %v218 = vadd.f32 %v208, %v214
    %v219 = vadd.f32 %v210, %v214
    %v220 = vpack.c.bf16 %v217, %v216
    %v221 = vpack.c.bf16 %v219, %v218
    %v222 = vld [vmem:[%s5] sm:$0xf]
    %v223 = vld [vmem:[%s5 + $0x4] sm:$0xf]
    %v224 = vld [vmem:[%s5 + $0x8] sm:$0xf]
    %v225 = vld [vmem:[%s5 + $0xc] sm:$0xf]
    %v226 = vld [vmem:[%s5 + $0x10] sm:$0xf]
    %v227 = vld [vmem:[%s5 + $0x14] sm:$0xf]
    %v228 = vld [vmem:[%s5 + $0x18] sm:$0xf]
    %v229 = vld [vmem:[%s5 + $0x1c] sm:$0xf]
    %v230 = vld [vmem:[%s5 + $0x20] sm:$0xf]
    %v231 = vld [vmem:[%s5 + $0x24] sm:$0xf]
    %v232 = vld [vmem:[%s5 + $0x28] sm:$0xf]
    %v233 = vld [vmem:[%s5 + $0x2c] sm:$0xf]
    %v246 = vunpack.c.l.b16 %v222
    %v247 = vunpack.c.l.b16 %v223
    %v248 = vunpack.c.l.b16 %v224
    %v249 = vunpack.c.l.b16 %v225
    %v250 = vunpack.c.l.b16 %v226
    %v251 = vunpack.c.l.b16 %v227
    %v252 = vunpack.c.l.b16 %v228
    %v253 = vunpack.c.l.b16 %v229
    %v254 = vunpack.c.l.b16 %v230
    %v255 = vunpack.c.l.b16 %v231
    %v256 = vunpack.c.l.b16 %v232
    %v257 = vunpack.c.l.b16 %v233
    %v258 = vpack.c.b16 %v247, %v246
    %v259 = vpack.c.b16 %v249, %v248
    %v260 = vpack.c.b16 %v251, %v250
    %v261 = vpack.c.b16 %v253, %v252
    %v262 = vpack.c.b16 %v255, %v254
    %v263 = vpack.c.b16 %v257, %v256
    %vm270 = vcmask 785408
    %v272 = vsel %vm270, %v220, 0
    %v275 = vsel %vm270, %v221, 0
    %277 = vmatpush.bf16.msra.mxu0 0
    %278 = vmatpush.bf16.msra.mxu0 0
    %279 = vmatpush.bf16.msra.mxu0 %v263
    %280 = vmatpush.bf16.msra.mxu0 %v262
    %281 = vmatpush.bf16.msra.mxu0 %v261
    %282 = vmatpush.bf16.msra.mxu0 %v260
    %283 = vmatpush.bf16.msra.mxu0 %v259
    %284 = vmatpush.bf16.msra.mxu0 %v258
    %285 = vmatmul.bf16.gmra.mxu0 %v272
    %v286 = vpop.f32.mrf.mxu0
    %v287 = vadd.f32 0.0, %v286
    %v288 = vpop.f32.mrf.mxu0
    %v289 = vadd.f32 0.0, %v288
    %290 = vmatmul.bf16.gmra.mxu0 %v275
    %v291 = vpop.f32.mrf.mxu0
    %v292 = vadd.f32 0.0, %v291
    %v293 = vpop.f32.mrf.mxu0
    %v294 = vadd.f32 0.0, %v293
    %295 = vdwg.mxu0
    %v296 = vld [vmem:[%s6] sm:$0xf]
    %v297 = vld [vmem:[%s6 + $0x4] sm:$0xf]
    %v298 = vld [vmem:[%s6 + $0x8] sm:$0xf]
    %v299 = vld [vmem:[%s6 + $0xc] sm:$0xf]
    %v304 = vunpack.c.l.b16 %v296
    %v305 = vunpack.c.l.b16 %v297
    %v306 = vunpack.c.l.b16 %v298
    %v307 = vunpack.c.l.b16 %v299
    %v308 = vpack.c.b16 %v305, %v304
    %v309 = vpack.c.b16 %v307, %v306
    %vm312 = vcmask 261120
    %v314 = vsel %vm312, %v116, 0
    %v317 = vsel %vm312, %v117, 0
    %319 = vmatpush.bf16.msra.mxu0 0
    %320 = vmatpush.bf16.msra.mxu0 0
    %321 = vmatpush.bf16.msra.mxu0 0
    %322 = vmatpush.bf16.msra.mxu0 0
    %323 = vmatpush.bf16.msra.mxu0 0
    %324 = vmatpush.bf16.msra.mxu0 0
    %325 = vmatpush.bf16.msra.mxu0 %v309
    %326 = vmatpush.bf16.msra.mxu0 %v308
    %327 = vmatmul.bf16.gmra.mxu0 %v314
    %v328 = vpop.f32.mrf.mxu0
    %v329 = vadd.f32 0.0, %v328
    %v330 = vpop.f32.mrf.mxu0
    %v331 = vadd.f32 0.0, %v330
    %332 = vmatmul.bf16.gmra.mxu0 %v317
    %v333 = vpop.f32.mrf.mxu0
    %v334 = vadd.f32 0.0, %v333
    %v335 = vpop.f32.mrf.mxu0
    %v336 = vadd.f32 0.0, %v335
    %337 = vdwg.mxu0
    %v338 = vld [vmem:[#allocation10] sm:$0x1]
    %v339 = vadd.f32 %v287, %v329
    %v340 = vadd.f32 %v289, %v331
    %v341 = vadd.f32 %v292, %v334
    %v342 = vadd.f32 %v294, %v336
    %v344 = vperm.slane %v338, 0
    %v346 = vadd.f32 %v339, %v344
    %v347 = vadd.f32 %v340, %v344
    %v348 = vadd.f32 %v341, %v344
    %v349 = vadd.f32 %v342, %v344
    %v350 = vxor.u32 %v346, 2147483648
    %v351 = vxor.u32 %v347, 2147483648
    %v352 = vxor.u32 %v348, 2147483648
    %v353 = vxor.u32 %v349, 2147483648
    %v354 = vmul.f32 %v350, 1.442695
    %v355 = vpow.pop %v354
    %v356 = vmul.f32 %v351, 1.442695
    %v357 = vpow.pop %v356
    %v358 = vmul.f32 %v352, 1.442695
    %v359 = vpow.pop %v358
    %v360 = vmul.f32 %v353, 1.442695
    %v361 = vpow.pop %v360
    %v362 = vadd.f32 %v355, 1.0
    %v363 = vadd.f32 %v357, 1.0
    %v364 = vadd.f32 %v359, 1.0
    %v365 = vadd.f32 %v361, 1.0
    %v366 = vrcp.pop %v362
    %v367 = vmul.f32 %v362, %v366
    %v368 = vsub.f32 1.0, %v367
    %v369 = vmul.f32 %v366, %v368
    %v370 = vadd.f32 %v366, %v369
    %vm371 = vweird.f32 %v362
    %vm372 = vweird.f32 %v366
    %vm373 = vmor %vm371, %vm372
    %v374 = vsel %vm373, %v366, %v370
    %v375 = vand.u32 2147483647, %v362
    %vm376 = vcmp.eq.f32.partialorder %v375, 8.507059e+37
    %v377 = vand.u32 %v362, 2147483648
    %v378 = vor.u32 1.1754944e-38, %v377
    %v379 = vsel %vm376, %v378, %v374
    %v380 = vmul.f32 1.0, %v379
    %v381 = vrcp.pop %v363
    %v382 = vmul.f32 %v363, %v381
    %v383 = vsub.f32 1.0, %v382
    %v384 = vmul.f32 %v381, %v383
    %v385 = vadd.f32 %v381, %v384
    %vm386 = vweird.f32 %v363
    %vm387 = vweird.f32 %v381
    %vm388 = vmor %vm386, %vm387
    %v389 = vsel %vm388, %v381, %v385
    %v390 = vand.u32 2147483647, %v363
    %vm391 = vcmp.eq.f32.partialorder %v390, 8.507059e+37
    %v392 = vand.u32 %v363, 2147483648
    %v393 = vor.u32 1.1754944e-38, %v392
    %v394 = vsel %vm391, %v393, %v389
    %v395 = vmul.f32 1.0, %v394
    %v396 = vrcp.pop %v364
    %v397 = vmul.f32 %v364, %v396
    %v398 = vsub.f32 1.0, %v397
    %v399 = vmul.f32 %v396, %v398
    %v400 = vadd.f32 %v396, %v399
    %vm401 = vweird.f32 %v364
    %vm402 = vweird.f32 %v396
    %vm403 = vmor %vm401, %vm402
    %v404 = vsel %vm403, %v396, %v400
    %v405 = vand.u32 2147483647, %v364
    %vm406 = vcmp.eq.f32.partialorder %v405, 8.507059e+37
    %v407 = vand.u32 %v364, 2147483648
    %v408 = vor.u32 1.1754944e-38, %v407
    %v409 = vsel %vm406, %v408, %v404
    %v410 = vmul.f32 1.0, %v409
    %v411 = vrcp.pop %v365
    %v412 = vmul.f32 %v365, %v411
    %v413 = vsub.f32 1.0, %v412
    %v414 = vmul.f32 %v411, %v413
    %v415 = vadd.f32 %v411, %v414
    %vm416 = vweird.f32 %v365
    %vm417 = vweird.f32 %v411
    %vm418 = vmor %vm416, %vm417
    %v419 = vsel %vm418, %v411, %v415
    %v420 = vand.u32 2147483647, %v365
    %vm421 = vcmp.eq.f32.partialorder %v420, 8.507059e+37
    %v422 = vand.u32 %v365, 2147483648
    %v423 = vor.u32 1.1754944e-38, %v422
    %v424 = vsel %vm421, %v423, %v419
    %v425 = vmul.f32 1.0, %v424
    %430 = vrot.lane.b32.xlu0 %v380, 96
    %v431 = vpop.permute.xlu0 %430
    %432 = vrot.lane.b32.xlu0 %v395, 96
    %v433 = vpop.permute.xlu0 %432
    %434 = vrot.lane.b32.xlu0 %v410, 96
    %v435 = vpop.permute.xlu0 %434
    %436 = vrot.lane.b32.xlu0 %v425, 96
    %v437 = vpop.permute.xlu0 %436
    %v442 = vmul.f32 %v112, %v431
    %v443 = vmul.f32 %v113, %v433
    %v444 = vmul.f32 %v114, %v435
    %v445 = vmul.f32 %v115, %v437
    %v446 = vpack.c.bf16 %v443, %v442
    %v447 = vpack.c.bf16 %v445, %v444
    %v448 = vld [vmem:[#allocation8] sm:$0xf]
    %v449 = vld [vmem:[#allocation8 + $0x4] sm:$0xf]
    %v450 = vld [vmem:[#allocation8 + $0x8] sm:$0xf]
    %v451 = vld [vmem:[#allocation8 + $0xc] sm:$0xf]
    %v456 = vunpack.c.l.b16 %v448
    %v457 = vunpack.c.l.b16 %v449
    %v458 = vunpack.c.l.b16 %v450
    %v459 = vunpack.c.l.b16 %v451
    %v460 = vpack.c.b16 %v457, %v456
    %v461 = vpack.c.b16 %v459, %v458
    %v465 = vsel %vm312, %v446, 0
    %v468 = vsel %vm312, %v447, 0
    %470 = vmatpush.bf16.msra.mxu0 0
    %471 = vmatpush.bf16.msra.mxu0 0
    %472 = vmatpush.bf16.msra.mxu0 0
    %473 = vmatpush.bf16.msra.mxu0 0
    %474 = vmatpush.bf16.msra.mxu0 0
    %475 = vmatpush.bf16.msra.mxu0 0
    %476 = vmatpush.bf16.msra.mxu0 %v461
    %477 = vmatpush.bf16.msra.mxu0 %v460
    %478 = vmatmul.bf16.gmra.mxu0 %v465
    %v479 = vpop.f32.mrf.mxu0
    %v480 = vadd.f32 0.0, %v479
    %v481 = vpop.f32.mrf.mxu0
    %v482 = vadd.f32 0.0, %v481
    %483 = vmatmul.bf16.gmra.mxu0 %v468
    %v484 = vpop.f32.mrf.mxu0
    %v485 = vadd.f32 0.0, %v484
    %v486 = vpop.f32.mrf.mxu0
    %v487 = vadd.f32 0.0, %v486
    %488 = vdwg.mxu0
    %493 = vrot.lane.b32.xlu0 %v480, 64
    %v494 = vpop.permute.xlu0 %493
    %495 = vrot.lane.b32.xlu0 %v482, 64
    %v496 = vpop.permute.xlu0 %495
    %497 = vrot.lane.b32.xlu0 %v485, 64
    %v498 = vpop.permute.xlu0 %497
    %499 = vrot.lane.b32.xlu0 %v487, 64
    %v500 = vpop.permute.xlu0 %499
    %v505 = vadd.f32 %v287, %v494
    %v506 = vadd.f32 %v289, %v496
    %v507 = vadd.f32 %v292, %v498
    %v508 = vadd.f32 %v294, %v500
    %v509 = vadd.f32 %v505, %v344
    %v510 = vadd.f32 %v506, %v344
    %v511 = vadd.f32 %v507, %v344
    %v512 = vadd.f32 %v508, %v344
    %v513 = vtanh.pop %v509
    %v514 = vtanh.pop %v510
    %v515 = vtanh.pop %v511
    %v516 = vtanh.pop %v512
    %v517 = vmul.f32 %v380, %v112
    %v518 = vmul.f32 %v395, %v113
    %v519 = vmul.f32 %v410, %v114
    %v520 = vmul.f32 %v425, %v115
    %v521 = vsub.f32 1.0, %v380
    %v522 = vsub.f32 1.0, %v395
    %v523 = vsub.f32 1.0, %v410
    %v524 = vsub.f32 1.0, %v425
    %529 = vrot.lane.b32.xlu0 %v513, 64
    %v530 = vpop.permute.xlu0 %529
    %531 = vrot.lane.b32.xlu0 %v514, 64
    %v532 = vpop.permute.xlu0 %531
    %533 = vrot.lane.b32.xlu0 %v515, 64
    %v534 = vpop.permute.xlu0 %533
    %535 = vrot.lane.b32.xlu0 %v516, 64
    %v536 = vpop.permute.xlu0 %535
    %v541 = vmul.f32 %v521, %v530
    %v542 = vmul.f32 %v522, %v532
    %v543 = vmul.f32 %v523, %v534
    %v544 = vmul.f32 %v524, %v536
    %v545 = vadd.f32 %v517, %v541
    %v546 = vadd.f32 %v518, %v542
    %v547 = vadd.f32 %v519, %v543
    %v548 = vadd.f32 %v520, %v544
    %549 = vst.msk [vmem:[#allocation11] sm:$0xff] %vm312, %v545
    %550 = vst.msk [vmem:[#allocation11 + $0x8] sm:$0xff] %vm312, %v546
    %551 = vst.msk [vmem:[#allocation11 + $0x10] sm:$0xff] %vm312, %v547
    %552 = vst.msk [vmem:[#allocation11 + $0x18] sm:$0xff] %vm312, %v548
    // Predicated region
    $region58: #{tgcn_forward.1} parent=1 // pred_check
      _
    $region59: #{tgcn_forward.1} parent=1 // pred_check_branch
      %554 = sbr.rel (0) target = $region61
    $region60: #{tgcn_forward.1} parent=1 // pred_region
      %556 = vsyncadd [#allocation4], 0
      %s557 = sshll.u32 [#allocation11], 4
      %s558 = int_to_ptr.vmem [resolvable:$true] %s557
      %s559 = sshll.u32 %s9, 4
      %s560 = int_to_ptr.hbm [resolvable:$true] %s559
      %565 = dma.vmem_to_hbm [thread:$0]  %s558, 512, %s560, [#allocation4], 128, 128, 8
    $region61: #{tgcn_forward.1} parent=1 // pred_fallthru
      _
    // Predicated region
    $region62: #{tgcn_forward.1} parent=1 // pred_check
      _
    $region63: #{tgcn_forward.1} parent=1 // pred_check_branch
      %567 = sbr.rel (0) target = $region65
    $region64: #{tgcn_forward.1} parent=1 // pred_region
      %569 = dma.done [#allocation4], 512
    $region65: #{tgcn_forward.1} parent=1 // pred_fallthru
      _
    %570 = vsyncpa [#allocation3], 1
    %571 = vsyncpa [#allocation6], 1
    %572 = vsyncpa [#allocation9], 1
    %573 = vsyncpa [#allocation4], 1

</llo_original>
